<compile_context>
chip_gen: v7x
topology: tpu7x:2x2x1
jax: 0.10.0
libtpu: 0.0.40
codegen_flags: <defaults>
</compile_context>

<pallas_src>
import jax
import jax.numpy as jnp
from jax.experimental import pallas as pl
from jax.experimental.pallas import tpu as pltpu

PAD_ID = -1
LANES = 128  # lane width for the lane-dense cut_len output


def _make_cut_kernel(num_cut_tokens: int, seq_len: int, tm: int):
    def cut_kernel(cut_ref, tok_ref, out_tok_ref, out_len_ref):
        toks = tok_ref[...]                                   # [TM, L] int32
        pos = jax.lax.broadcasted_iota(jnp.int32, (tm, seq_len), 1)

        # Fused membership + position masking: positions holding a cut token
        # get their own index, everything else gets L.  (At a matching element
        # the written value is its own position, so overwrites across the
        # static per-cut-token loop are idempotent.)
        masked_pos = jnp.full((tm, seq_len), seq_len, dtype=jnp.int32)
        for t in range(num_cut_tokens):
            masked_pos = jnp.where(toks == cut_ref[t], pos, masked_pos)

        # First occurrence per row (L if no cut token).
        cut_len = jnp.min(masked_pos, axis=1, keepdims=True)  # [TM, 1]

        # sentence[:idx] -> keep positions strictly before the cut index.
        keep = pos < cut_len
        out_tok_ref[...] = jnp.where(keep, toks, jnp.int32(PAD_ID))
        # Lane-dense write: broadcast across 128 lanes (wrapper slices [:, :1]).
        out_len_ref[...] = jnp.broadcast_to(cut_len, (tm, LANES))

    return cut_kernel


def _choose_tile(batch_pad: int, seq_len: int) -> int:
    """Pick the batch tile: biggest multiple of 8 that keeps double-buffered
    (in-token, out-token, out-len) blocks under a conservative VMEM budget."""
    budget_bytes = 12 * 1024 * 1024  # fits v5e's 16 MiB scoped default w/ headroom
    per_row = (seq_len * 4) * 2 * 2 + (LANES * 4) * 2  # in+out toks, len; x2 buffers
    tm_fit = max(8, (budget_bytes // per_row) // 8 * 8)
    return min(512, tm_fit, batch_pad)


def cut_sentences_at_tokens(token_ids: jax.Array, cut_token_ids: jax.Array):
    """token_ids: [B, L] int32, cut_token_ids: [T] int32
       -> (out_tokens [B, L] int32, cut_len [B, 1] int32)."""
    B, L = token_ids.shape
    T = cut_token_ids.shape[0]

    # Pad batch to a sublane multiple, then to a multiple of the chosen tile.
    B_pad = pl.cdiv(B, 8) * 8
    TM = _choose_tile(B_pad, L)
    B_pad = pl.cdiv(B_pad, TM) * TM
    if B_pad != B:
        token_ids = jnp.pad(token_ids, ((0, B_pad - B), (0, 0)))

    # Explicit scoped-VMEM limit: actual double-buffered footprint + headroom.
    block_bytes = 2 * (TM * L * 4 + TM * L * 4 + TM * LANES * 4)
    vmem_limit = min(max(2 * block_bytes, 16 * 1024 * 1024), 32 * 1024 * 1024)

    kernel = _make_cut_kernel(T, L, TM)
    grid_spec = pltpu.PrefetchScalarGridSpec(
        num_scalar_prefetch=1,                       # cut token ids -> SMEM
        grid=(B_pad // TM,),
        in_specs=[
            pl.BlockSpec((TM, L), lambda i, cut: (i, 0)),       # token ids
        ],
        out_specs=(
            pl.BlockSpec((TM, L), lambda i, cut: (i, 0)),       # out tokens
            pl.BlockSpec((TM, LANES), lambda i, cut: (i, 0)),   # lane-dense len
        ),
    )

    out_tokens, cut_len_wide = pl.pallas_call(
        kernel,
        out_shape=(
            jax.ShapeDtypeStruct((B_pad, L), jnp.int32),
            jax.ShapeDtypeStruct((B_pad, LANES), jnp.int32),
        ),
        grid_spec=grid_spec,
        compiler_params=pltpu.CompilerParams(
            dimension_semantics=("parallel",),
            vmem_limit_bytes=vmem_limit,
        ),
    )(cut_token_ids, token_ids)

    return out_tokens[:B], cut_len_wide[:B, :1]


def _reference_cut(sentences, cut_tokens):
    # Direct port of the PyTorch module's forward (list-of-lists of "words").
    result = []
    for sentence in sentences:
        idx = None
        for i, word in enumerate(sentence):
            if word in cut_tokens:
                idx = i
                break
        result.append(sentence[:idx])
    return result


if __name__ == "__main__":
    # Small deterministic example.
    B, L = 8, 128
    VOCAB = 16
    key = jax.random.PRNGKey(0)
    token_ids = jax.random.randint(key, (B, L), minval=0, maxval=VOCAB, dtype=jnp.int32)

    # "Vocabulary": id -> word.  Cut tokens are "." (id 1) and "<eos>" (id 2).
    id_to_word = {i: f"w{i}" for i in range(VOCAB)}
    id_to_word[1] = "."
    id_to_word[2] = "<eos>"
    cut_words = [".", "<eos>"]
    cut_ids = jnp.array([1, 2], dtype=jnp.int32)

    out_tokens, cut_len = cut_sentences_at_tokens(token_ids, cut_ids)
    out_tokens = jax.block_until_ready(out_tokens)
    cut_len = jax.block_until_ready(cut_len)

    # Validate against the pure-Python reference semantics of the module.
    ids_host = jax.device_get(token_ids)
    out_host = jax.device_get(out_tokens)
    len_host = jax.device_get(cut_len)

    sentences = [[id_to_word[int(t)] for t in row] for row in ids_host]
    expected = _reference_cut(sentences, cut_words)

    for b in range(B):
        n = int(len_host[b, 0])
        got = [id_to_word[int(t)] for t in out_host[b, :n]]
        assert got == expected[b], (b, got, expected[b])
        # Everything after the cut must be PAD_ID.
        assert all(int(t) == PAD_ID for t in out_host[b, n:])

    # TODO(synk): string tokenization / detokenization stays on the host; only
    # the id-space cut (membership, first-occurrence, masking) runs on TPU.
    print("KERNEL_OK")
</pallas_src>

<mosaic_0001>
module attributes {stable_mosaic.version = 11 : i64} {
  func.func @cut_kernel(%arg0: i32, %arg1: memref<2xi32, #tpu.memory_space<smem>>, %arg2: memref<8x128xi32, #tpu.memory_space<vmem>>, %arg3: memref<8x128xi32, #tpu.memory_space<vmem>>, %arg4: memref<8x128xi32, #tpu.memory_space<vmem>>) attributes {dimension_semantics = [#tpu.dimension_semantics<parallel>], iteration_bounds = array<i64: 1>, scalar_prefetch = 1 : i64, scratch_operands = 0 : i64, tpu.core_type = #tpu.core_type<tc>, window_params = [{transform_indices = @transform_0, window_bounds = array<i64: 8, 128>}, {transform_indices = @transform_1, window_bounds = array<i64: 8, 128>}, {transform_indices = @transform_2, window_bounds = array<i64: 8, 128>}]} {
    %c0 = arith.constant 0 : index
    %c0_0 = arith.constant 0 : index
    %0 = vector.load %arg2[%c0, %c0_0] : memref<8x128xi32, #tpu.memory_space<vmem>>, vector<8x128xi32>
    %1 = tpu.iota {dimensions = array<i32: 1>} : vector<8x128xi32>
    %c128_i32 = arith.constant 128 : i32
    %2 = vector.broadcast %c128_i32 : i32 to vector<8x128xi32>
    %c0_1 = arith.constant 0 : index
    %3 = memref.load %arg1[%c0_1] : memref<2xi32, #tpu.memory_space<smem>>
    %4 = vector.broadcast %3 : i32 to vector<8x128xi32>
    %5 = arith.cmpi eq, %0, %4 : vector<8x128xi32>
    %6 = arith.select %5, %1, %2 : vector<8x128xi1>, vector<8x128xi32>
    %c1 = arith.constant 1 : index
    %7 = memref.load %arg1[%c1] : memref<2xi32, #tpu.memory_space<smem>>
    %8 = vector.broadcast %7 : i32 to vector<8x128xi32>
    %9 = arith.cmpi eq, %0, %8 : vector<8x128xi32>
    %10 = arith.select %9, %1, %6 : vector<8x128xi1>, vector<8x128xi32>
    %cst = arith.constant dense<2147483647> : vector<8xi32>
    %11 = vector.multi_reduction <minsi>, %10, %cst [1] : vector<8x128xi32> to vector<8xi32>
    %12 = vector.shape_cast %11 : vector<8xi32> to vector<8x1xi32>
    %13 = vector.broadcast %12 : vector<8x1xi32> to vector<8x128xi32>
    %14 = arith.cmpi slt, %1, %13 : vector<8x128xi32>
    %c-1_i32 = arith.constant -1 : i32
    %15 = vector.broadcast %c-1_i32 : i32 to vector<8x128xi32>
    %16 = arith.select %14, %0, %15 : vector<8x128xi1>, vector<8x128xi32>
    %c0_2 = arith.constant 0 : index
    %c0_3 = arith.constant 0 : index
    %17 = vector.load %arg3[%c0_2, %c0_3] : memref<8x128xi32, #tpu.memory_space<vmem>>, vector<8x128xi32>
    tpu.vector_store %arg3[%c0_2, %c0_3], %16 {strides = array<i32>} : memref<8x128xi32, #tpu.memory_space<vmem>>, vector<8x128xi32>,
    %18 = vector.shape_cast %12 : vector<8x1xi32> to vector<8x1xi32>
    %19 = vector.broadcast %18 : vector<8x1xi32> to vector<8x128xi32>
    %c0_4 = arith.constant 0 : index
    %c0_5 = arith.constant 0 : index
    %20 = vector.load %arg4[%c0_4, %c0_5] : memref<8x128xi32, #tpu.memory_space<vmem>>, vector<8x128xi32>
    tpu.vector_store %arg4[%c0_4, %c0_5], %19 {strides = array<i32>} : memref<8x128xi32, #tpu.memory_space<vmem>>, vector<8x128xi32>,
    return
  }
  func.func @transform_0(%arg0: i32, %arg1: memref<2xi32, #tpu.memory_space<smem>>) -> (i32, i32) {
    %c0_i32 = arith.constant 0 : i32
    %c0_i32_0 = arith.constant 0 : i32
    return %arg0, %c0_i32 : i32, i32
  }
  func.func @transform_1(%arg0: i32, %arg1: memref<2xi32, #tpu.memory_space<smem>>) -> (i32, i32) {
    %c0_i32 = arith.constant 0 : i32
    %c0_i32_0 = arith.constant 0 : i32
    return %arg0, %c0_i32 : i32, i32
  }
  func.func @transform_2(%arg0: i32, %arg1: memref<2xi32, #tpu.memory_space<smem>>) -> (i32, i32) {
    %c0_i32 = arith.constant 0 : i32
    %c0_i32_0 = arith.constant 0 : i32
    return %arg0, %c0_i32 : i32, i32
  }
}

</mosaic_0001>

<llo_original>
// kernel: tpu_custom_call.1
$region0: #{tpu_custom_call.1}
  #allocation0 [shape = 'u32[]', space=smem, size = 0x4, offset = 0x4, fixed_abs, tag = 'smem constant byte address 0x4 - core index']
  #allocation1 [shape = 'u32[144,128]{1,0:T(1,128)}', space=vmem, size = 0x12000, scoped, tag = 'internal scratch']
  #allocation2 [shape = 's32[1]{0}', space=sflag, size = 0x4, scoped, tag = 'scoped memory for tpu_custom_call.1']
  #allocation3 [shape = 'u8[512]{0}', space=smem, size = 0x200, scoped, tag = 'prefetched SMEM operand 0']
  %s0 = inlined_call_operand.hbm [shape: s32[2], index: 0, kind: input, shape index: {}]
  %s1 = inlined_call_operand.hbm [shape: s32[8,128], index: 1, kind: input, shape index: {}]
  %s2 = inlined_call_operand.hbm [shape: s32[8,128], index: 2, kind: output, shape index: {0}]
  %s3 = inlined_call_operand.hbm [shape: s32[8,128], index: 3, kind: output, shape index: {1}]
  %4 = xla_tuple %s2, %s3
  %s5 = sld [smem:[#allocation0]]
  $region26: #{tpu_custom_call.1} parent=0
    _
  %s7 = ssub.s32 1, %s5
  %s8 = scalar_select 0, %s7, %s5
  %10 = dma.hbm_to_smem %s0, 16, [#allocation3], [#allocation2]
  %11 = dma.done [#allocation2], 16
  %12 = sfence
  $region1: #{tpu_custom_call.1} parent=0
    #allocation4 [shape = 'u8[4096]{0}', space=vmem, size = 0x1000, scoped, tag = 'input window, operand 1, single buffered']
    #allocation5 [shape = 's32[1]{0}', space=sflag, size = 0x4, scoped, tag = 'scoped memory for tpu_custom_call.1']
    #allocation6 [shape = 's32[1]{0}', space=sflag, size = 0x4, scoped, tag = 'scoped memory for tpu_custom_call.1']
    #allocation7 [shape = 'u8[4096]{0}', space=vmem, size = 0x1000, scoped, tag = 'output window, operand 0, single buffered']
    #allocation8 [shape = 'u8[4096]{0}', space=vmem, size = 0x1000, scoped, tag = 'output window, operand 1, single buffered']
    #allocation9 [shape = 's32[1]{0}', space=sflag, size = 0x4, scoped, tag = 'scoped memory for tpu_custom_call.1']
    %13 = vsyncpa [#allocation5], 0
    %14 = vsyncpa [#allocation6], 0
    %15 = vsyncpa [#allocation9], 0
    // Predicated region
    $region2: #{tpu_custom_call.1} parent=1 // pred_check
      _
    $region3: #{tpu_custom_call.1} parent=1 // pred_check_branch
      %17 = sbr.rel (0) target = $region5
    $region4: #{tpu_custom_call.1} parent=1 // pred_region
      %s19 = ssub.s32 128, 128
      %20 = vsyncadd [#allocation5], %s19
      %s22 = sshll.u32 [#allocation4], 4
      %s23 = int_to_ptr.vmem [resolvable:$true] %s22
      %25 = dma.hbm_to_vmem [thread:$0]  %s1, 128, %s23, [#allocation5]
    $region5: #{tpu_custom_call.1} parent=1 // pred_fallthru
      _
    // Predicated region
    $region6: #{tpu_custom_call.1} parent=1 // pred_check
      _
    $region7: #{tpu_custom_call.1} parent=1 // pred_check_branch
      %27 = sbr.rel (0) target = $region9
    $region8: #{tpu_custom_call.1} parent=1 // pred_region
      %28 = dma.done [#allocation5], 128
    $region9: #{tpu_custom_call.1} parent=1 // pred_fallthru
      _
    %v29 = vld [vmem:[#allocation4] sm:$0xff]
    %v30 = vlaneseq
    %v31 = vand.u32 %v30, 127
    %s32 = sld [smem:[#allocation3]]
    %v33 = vstv %s32
    %vm34 = vcmp.eq.s32.totalorder %v29, %v33
    %v35 = vsel %vm34, %v31, 128
    %s36 = sld [smem:[#allocation3 + $0x1]]
    %v37 = vstv %s36
    %vm38 = vcmp.eq.s32.totalorder %v29, %v37
    %v39 = vsel %vm38, %v31, %v35
    %v40 = vand.u32 %v39, 65535
    %v41 = vshra.s32 %v39, 16
    %v42 = vcvt.s32.f32 %v40
    %v43 = vcvt.s32.f32 %v41
    %44 = vmin.xlane.f32.xlu0 %v43
    %v45 = vpop.xlane.xlu0 %44
    %vm46 = vcmp.eq.f32.partialorder %v43, %v45
    %v47 = vsel %vm46, %v42, inf
    %48 = vmin.xlane.f32.xlu0 %v47
    %v49 = vpop.xlane.xlu0 %48
    %v50 = vcvt.f32.s32 %v49
    %v51 = vcvt.f32.s32 %v45
    %v52 = vshll.u32 %v51, 16
    %v53 = vadd.s32 %v52, %v50
    %vm54 = vcmp.lt.s32.totalorder %v31, %v53
    %v55 = vsel %vm54, %v29, 4294967295
    %56 = vst [vmem:[#allocation7] sm:$0xff] %v55
    %57 = vst [vmem:[#allocation8] sm:$0xff] %v53
    // Predicated region
    $region10: #{tpu_custom_call.1} parent=1 // pred_check
      _
    $region11: #{tpu_custom_call.1} parent=1 // pred_check_branch
      %59 = sbr.rel (0) target = $region13
    $region12: #{tpu_custom_call.1} parent=1 // pred_region
      %s61 = ssub.s32 128, 128
      %62 = vsyncadd [#allocation6], %s61
      %s64 = sshll.u32 [#allocation7], 4
      %s65 = int_to_ptr.vmem [resolvable:$true] %s64
      %67 = dma.vmem_to_hbm [thread:$0]  %s65, 128, %s2, [#allocation6]
    $region13: #{tpu_custom_call.1} parent=1 // pred_fallthru
      _
    // Predicated region
    $region14: #{tpu_custom_call.1} parent=1 // pred_check
      _
    $region15: #{tpu_custom_call.1} parent=1 // pred_check_branch
      %69 = sbr.rel (0) target = $region17
    $region16: #{tpu_custom_call.1} parent=1 // pred_region
      %s71 = ssub.s32 128, 128
      %72 = vsyncadd [#allocation9], %s71
      %s74 = sshll.u32 [#allocation8], 4
      %s75 = int_to_ptr.vmem [resolvable:$true] %s74
      %77 = dma.vmem_to_hbm [thread:$0]  %s75, 128, %s3, [#allocation9]
    $region17: #{tpu_custom_call.1} parent=1 // pred_fallthru
      _
    // Predicated region
    $region18: #{tpu_custom_call.1} parent=1 // pred_check
      _
    $region19: #{tpu_custom_call.1} parent=1 // pred_check_branch
      %79 = sbr.rel (0) target = $region21
    $region20: #{tpu_custom_call.1} parent=1 // pred_region
      %80 = dma.done [#allocation6], 128
    $region21: #{tpu_custom_call.1} parent=1 // pred_fallthru
      _
    // Predicated region
    $region22: #{tpu_custom_call.1} parent=1 // pred_check
      _
    $region23: #{tpu_custom_call.1} parent=1 // pred_check_branch
      %82 = sbr.rel (0) target = $region25
    $region24: #{tpu_custom_call.1} parent=1 // pred_region
      %83 = dma.done [#allocation9], 128
    $region25: #{tpu_custom_call.1} parent=1 // pred_fallthru
      _
    %84 = vsyncpa [#allocation5], 1
    %85 = vsyncpa [#allocation6], 1
    %86 = vsyncpa [#allocation9], 1

</llo_original>
